<compile_context>
chip_gen: v7x
topology: tpu7x:2x2x1
jax: 0.10.0
libtpu: 0.0.40
codegen_flags: <defaults>
</compile_context>

<pallas_src>
import jax
import jax.numpy as jnp
from jax.experimental import pallas as pl
from jax.experimental.pallas import tpu as pltpu


def _round_up(n, m):
    return -(-n // m) * m


def mlp_kernel(x_ref,
               w1_ref, b1_ref,
               w2_ref, b2_ref,
               w3_ref, b3_ref,
               w4_ref, b4_ref,
               o_ref):
    x = x_ref[...]  # (TILE_B, 2), f32

    # Layer 1: K=2 contraction -> pure VPU multiply-adds (an MXU pass would be ~all
    # fill/drain).  Kept f32: v5e's VALU has no bf16.
    h = (x[:, 0:1] * w1_ref[0:1, :]
         + x[:, 1:2] * w1_ref[1:2, :]
         + b1_ref[...])
    h = jnp.maximum(h, 0.0)

    # Layers 2 & 3 on the MXU.  Inputs are cast to the weight dtype (bf16 by default,
    # set in the wrapper) with f32 accumulation via preferred_element_type.
    h = jnp.dot(h.astype(w2_ref.dtype), w2_ref[...],
                preferred_element_type=jnp.float32) + b2_ref[...]
    h = jnp.maximum(h, 0.0)
    h = jnp.dot(h.astype(w3_ref.dtype), w3_ref[...],
                preferred_element_type=jnp.float32) + b3_ref[...]
    h = jnp.maximum(h, 0.0)

    # Layer 4: (64 -> 1) as VPU multiply + cross-lane reduce (XLU has slack); avoids a
    # zero-padded (TILE_B,64)x(64,128) MXU matmul and a 128-wide padded writeback.
    out = jnp.sum(h * w4_ref[...], axis=-1, keepdims=True) + b4_ref[...]
    o_ref[...] = out.astype(o_ref.dtype)


def regression_model_forward(x, params, *, tile_b=1024, compute_dtype=jnp.bfloat16):
    """x: [B, 2] float32.  params: list of (W, b) with W:[in,out], b:[1,out].  Returns [B, 1]."""
    (w1, b1), (w2, b2), (w3, b3), (w4, b4) = params
    B = x.shape[0]

    # bf16 MXU inputs by default (f32 accumulation kept in-kernel).  w1/w4 stay f32
    # because they run on the VPU/XLU path.
    if compute_dtype != jnp.float32:
        w2 = w2.astype(compute_dtype)
        w3 = w3.astype(compute_dtype)

    # Layer-4 weight as a (1, 64) row vector for the in-kernel broadcast-multiply.
    w4r = jnp.reshape(w4, (1, w4.shape[0])).astype(jnp.float32)   # (1, 64)
    b4r = jnp.reshape(b4, (1, 1)).astype(jnp.float32)             # (1, 1)

    # Pick the batch tile, then pad the batch to a TILE_B multiple (no OOB reads on
    # the last grid step).
    B_pad8 = _round_up(B, 8)
    TILE_B = min(_round_up(tile_b, 8), B_pad8)
    # v7x has 2 TensorCores: if one tile would cover a large batch, split it so the
    # "parallel" axis has >= 2 steps (core sharding + pipeline fill).
    if TILE_B >= B_pad8 and B_pad8 >= 512:
        TILE_B = _round_up(B_pad8 // 2, 8)
    B_pad = _round_up(B, TILE_B)
    if B_pad != B:
        x = jnp.pad(x, ((0, B_pad - B), (0, 0)))
    grid = (B_pad // TILE_B,)

    # Weights/biases: whole-array blocks with constant index_map -> VMEM-resident
    # across grid steps (no re-DMA).
    # TODO(synk): pipeline_mode=pl.Buffered(1) could drop the unused 2nd buffer for
    # these grid-invariant operands (~hundreds of KiB); left at default for safety.
    def resident(a):
        nd = a.ndim
        return pl.BlockSpec(a.shape, lambda i, _nd=nd: (0,) * _nd)

    flops = 2 * B_pad * (2 * 256 + 256 * 128 + 128 * 64 + 64 * 1)
    bytes_accessed = (x.size * x.dtype.itemsize + B_pad * 1 * 4
                      + sum(a.size * a.dtype.itemsize
                            for a in (w1, b1, w2, b2, w3, b3, w4r, b4r)))

    out = pl.pallas_call(
        mlp_kernel,
        out_shape=jax.ShapeDtypeStruct((B_pad, 1), jnp.float32),
        grid=grid,
        in_specs=[pl.BlockSpec((TILE_B, 2), lambda i: (i, 0)),
                  resident(w1), resident(b1),
                  resident(w2), resident(b2),
                  resident(w3), resident(b3),
                  resident(w4r), resident(b4r)],
        out_specs=pl.BlockSpec((TILE_B, 1), lambda i: (i, 0)),
        compiler_params=pltpu.CompilerParams(
            dimension_semantics=("parallel",)),
        cost_estimate=pl.CostEstimate(flops=flops,
                                      transcendentals=0,
                                      bytes_accessed=bytes_accessed),
    )(x, w1, b1, w2, b2, w3, b3, w4r, b4r)

    return out[:B, :]


def init_params(key):
    """Deterministic init mimicking nn.Linear's U(-1/sqrt(fan_in), 1/sqrt(fan_in))."""
    dims = [(2, 256), (256, 128), (128, 64), (64, 1)]
    params = []
    for (fan_in, fan_out) in dims:
        key, kw, kb = jax.random.split(key, 3)
        bound = 1.0 / jnp.sqrt(jnp.float32(fan_in))
        w = jax.random.uniform(kw, (fan_in, fan_out), jnp.float32, -bound, bound)
        b = jax.random.uniform(kb, (1, fan_out), jnp.float32, -bound, bound)
        params.append((w, b))
    return params


def reference_forward(x, params):
    h = x
    for i, (w, b) in enumerate(params):
        h = h @ w + b
        if i < len(params) - 1:
            h = jnp.maximum(h, 0.0)
    return h


if __name__ == "__main__":
    key = jax.random.PRNGKey(0)
    key, kx = jax.random.split(key)

    B = 8
    x = jax.random.normal(kx, (B, 2), jnp.float32)
    params = init_params(key)
    ref = reference_forward(x, params)

    # Exact-path check (f32 MXU inputs): tight tolerance.
    out_f32 = jax.block_until_ready(
        regression_model_forward(x, params, compute_dtype=jnp.float32))
    assert out_f32.shape == (B, 1)
    assert jnp.allclose(out_f32, ref, atol=1e-5, rtol=1e-5), \
        "f32 path mismatch vs. pure-JAX reference"

    # Default fast path (bf16 MXU inputs, f32 accumulation): looser tolerance is
    # expected precision loss, not a bug.
    out_bf16 = jax.block_until_ready(regression_model_forward(x, params))
    assert out_bf16.shape == (B, 1)
    assert jnp.allclose(out_bf16, ref, atol=5e-2, rtol=5e-2), \
        "bf16 path mismatch vs. pure-JAX reference"

    print("KERNEL_OK")
</pallas_src>

<mosaic_0001>
module attributes {stable_mosaic.version = 11 : i64} {
  func.func @mlp_kernel(%arg0: i32, %arg1: memref<8x2xf32, #tpu.memory_space<vmem>>, %arg2: memref<2x256xf32, #tpu.memory_space<vmem>>, %arg3: memref<1x256xf32, #tpu.memory_space<vmem>>, %arg4: memref<256x128xf32, #tpu.memory_space<vmem>>, %arg5: memref<1x128xf32, #tpu.memory_space<vmem>>, %arg6: memref<128x64xf32, #tpu.memory_space<vmem>>, %arg7: memref<1x64xf32, #tpu.memory_space<vmem>>, %arg8: memref<1x64xf32, #tpu.memory_space<vmem>>, %arg9: memref<1x1xf32, #tpu.memory_space<vmem>>, %arg10: memref<8x1xf32, #tpu.memory_space<vmem>>) attributes {dimension_semantics = [#tpu.dimension_semantics<parallel>], iteration_bounds = array<i64: 1>, scalar_prefetch = 0 : i64, scratch_operands = 0 : i64, tpu.core_type = #tpu.core_type<tc>, window_params = [{transform_indices = @transform_0, window_bounds = array<i64: 8, 2>}, {pipeline_mode = #tpu.pipeline_mode<synchronous>, transform_indices = @transform_1, window_bounds = array<i64: 2, 256>}, {pipeline_mode = #tpu.pipeline_mode<synchronous>, transform_indices = @transform_2, window_bounds = array<i64: 1, 256>}, {pipeline_mode = #tpu.pipeline_mode<synchronous>, transform_indices = @transform_3, window_bounds = array<i64: 256, 128>}, {pipeline_mode = #tpu.pipeline_mode<synchronous>, transform_indices = @transform_4, window_bounds = array<i64: 1, 128>}, {pipeline_mode = #tpu.pipeline_mode<synchronous>, transform_indices = @transform_5, window_bounds = array<i64: 128, 64>}, {pipeline_mode = #tpu.pipeline_mode<synchronous>, transform_indices = @transform_6, window_bounds = array<i64: 1, 64>}, {pipeline_mode = #tpu.pipeline_mode<synchronous>, transform_indices = @transform_7, window_bounds = array<i64: 1, 64>}, {pipeline_mode = #tpu.pipeline_mode<synchronous>, transform_indices = @transform_8, window_bounds = array<i64: 1, 1>}, {transform_indices = @transform_9, window_bounds = array<i64: 8, 1>}]} {
    %c0 = arith.constant 0 : index
    %c0_0 = arith.constant 0 : index
    %0 = vector.load %arg1[%c0, %c0_0] : memref<8x2xf32, #tpu.memory_space<vmem>>, vector<8x2xf32>
    %1 = vector.extract_strided_slice %0 {offsets = [0, 0], sizes = [8, 1], strides = [1, 1]} : vector<8x2xf32> to vector<8x1xf32>
    %c0_1 = arith.constant 0 : index
    %c0_2 = arith.constant 0 : index
    %2 = vector.load %arg2[%c0_1, %c0_2] : memref<2x256xf32, #tpu.memory_space<vmem>>, vector<1x256xf32>
    %3 = vector.broadcast %1 : vector<8x1xf32> to vector<8x256xf32>
    %4 = vector.broadcast %2 : vector<1x256xf32> to vector<8x256xf32>
    %5 = arith.mulf %3, %4 : vector<8x256xf32>
    %6 = vector.extract_strided_slice %0 {offsets = [0, 1], sizes = [8, 1], strides = [1, 1]} : vector<8x2xf32> to vector<8x1xf32>
    %c1 = arith.constant 1 : index
    %c0_3 = arith.constant 0 : index
    %7 = vector.load %arg2[%c1, %c0_3] : memref<2x256xf32, #tpu.memory_space<vmem>>, vector<1x256xf32>
    %8 = vector.broadcast %6 : vector<8x1xf32> to vector<8x256xf32>
    %9 = vector.broadcast %7 : vector<1x256xf32> to vector<8x256xf32>
    %10 = arith.mulf %8, %9 : vector<8x256xf32>
    %11 = arith.addf %5, %10 : vector<8x256xf32>
    %c0_4 = arith.constant 0 : index
    %c0_5 = arith.constant 0 : index
    %12 = vector.load %arg3[%c0_4, %c0_5] : memref<1x256xf32, #tpu.memory_space<vmem>>, vector<1x256xf32>
    %13 = vector.broadcast %12 : vector<1x256xf32> to vector<8x256xf32>
    %14 = arith.addf %11, %13 : vector<8x256xf32>
    %cst = arith.constant 0.000000e+00 : f32
    %15 = vector.broadcast %cst : f32 to vector<8x256xf32>
    %16 = arith.maximumf %14, %15 : vector<8x256xf32>
    %c0_6 = arith.constant 0 : index
    %c0_7 = arith.constant 0 : index
    %17 = vector.load %arg4[%c0_6, %c0_7] : memref<256x128xf32, #tpu.memory_space<vmem>>, vector<256x128xf32>
    %cst_8 = arith.constant dense<0.000000e+00> : vector<8x128xf32>
    %18 = tpu.matmul %16, %17, %cst_8 {dimension_numbers = #tpu.dot_dimension_numbers<[1], [0], [0], [1], [0, 0, 1, 1], [], []>} : vector<8x256xf32>, vector<256x128xf32>, vector<8x128xf32> -> vector<8x128xf32>
    %c0_9 = arith.constant 0 : index
    %c0_10 = arith.constant 0 : index
    %19 = vector.load %arg5[%c0_9, %c0_10] : memref<1x128xf32, #tpu.memory_space<vmem>>, vector<1x128xf32>
    %20 = vector.broadcast %19 : vector<1x128xf32> to vector<8x128xf32>
    %21 = arith.addf %18, %20 : vector<8x128xf32>
    %cst_11 = arith.constant 0.000000e+00 : f32
    %22 = vector.broadcast %cst_11 : f32 to vector<8x128xf32>
    %23 = arith.maximumf %21, %22 : vector<8x128xf32>
    %c0_12 = arith.constant 0 : index
    %c0_13 = arith.constant 0 : index
    %24 = vector.load %arg6[%c0_12, %c0_13] : memref<128x64xf32, #tpu.memory_space<vmem>>, vector<128x64xf32>
    %cst_14 = arith.constant dense<0.000000e+00> : vector<8x64xf32>
    %25 = tpu.matmul %23, %24, %cst_14 {dimension_numbers = #tpu.dot_dimension_numbers<[1], [0], [0], [1], [0, 0, 1, 1], [], []>} : vector<8x128xf32>, vector<128x64xf32>, vector<8x64xf32> -> vector<8x64xf32>
    %c0_15 = arith.constant 0 : index
    %c0_16 = arith.constant 0 : index
    %26 = vector.load %arg7[%c0_15, %c0_16] : memref<1x64xf32, #tpu.memory_space<vmem>>, vector<1x64xf32>
    %27 = vector.broadcast %26 : vector<1x64xf32> to vector<8x64xf32>
    %28 = arith.addf %25, %27 : vector<8x64xf32>
    %cst_17 = arith.constant 0.000000e+00 : f32
    %29 = vector.broadcast %cst_17 : f32 to vector<8x64xf32>
    %30 = arith.maximumf %28, %29 : vector<8x64xf32>
    %c0_18 = arith.constant 0 : index
    %c0_19 = arith.constant 0 : index
    %31 = vector.load %arg8[%c0_18, %c0_19] : memref<1x64xf32, #tpu.memory_space<vmem>>, vector<1x64xf32>
    %32 = vector.broadcast %31 : vector<1x64xf32> to vector<8x64xf32>
    %33 = arith.mulf %30, %32 : vector<8x64xf32>
    %cst_20 = arith.constant dense<0.000000e+00> : vector<8xf32>
    %34 = vector.multi_reduction <add>, %33, %cst_20 [1] : vector<8x64xf32> to vector<8xf32>
    %35 = vector.shape_cast %34 : vector<8xf32> to vector<8x1xf32>
    %c0_21 = arith.constant 0 : index
    %c0_22 = arith.constant 0 : index
    %36 = vector.load %arg9[%c0_21, %c0_22] : memref<1x1xf32, #tpu.memory_space<vmem>>, vector<1x1xf32>
    %37 = vector.broadcast %36 : vector<1x1xf32> to vector<8x1xf32>
    %38 = arith.addf %35, %37 : vector<8x1xf32>
    %c0_23 = arith.constant 0 : index
    %c0_24 = arith.constant 0 : index
    %39 = vector.load %arg10[%c0_23, %c0_24] : memref<8x1xf32, #tpu.memory_space<vmem>>, vector<8x1xf32>
    tpu.vector_store %arg10[%c0_23, %c0_24], %38 {strides = array<i32>} : memref<8x1xf32, #tpu.memory_space<vmem>>, vector<8x1xf32>,
    return
  }
  func.func @transform_0(%arg0: i32) -> (i32, i32) {
    %c0_i32 = arith.constant 0 : i32
    %c0_i32_0 = arith.constant 0 : i32
    return %arg0, %c0_i32 : i32, i32
  }
  func.func @transform_1(%arg0: i32) -> (i32, i32) {
    %c0_i32 = arith.constant 0 : i32
    %c0_i32_0 = arith.constant 0 : i32
    %c0_i32_1 = arith.constant 0 : i32
    return %c0_i32, %c0_i32_0 : i32, i32
  }
  func.func @transform_2(%arg0: i32) -> (i32, i32) {
    %c0_i32 = arith.constant 0 : i32
    %c0_i32_0 = arith.constant 0 : i32
    %c0_i32_1 = arith.constant 0 : i32
    return %c0_i32, %c0_i32_0 : i32, i32
  }
  func.func @transform_3(%arg0: i32) -> (i32, i32) {
    %c0_i32 = arith.constant 0 : i32
    %c0_i32_0 = arith.constant 0 : i32
    %c0_i32_1 = arith.constant 0 : i32
    return %c0_i32, %c0_i32_0 : i32, i32
  }
  func.func @transform_4(%arg0: i32) -> (i32, i32) {
    %c0_i32 = arith.constant 0 : i32
    %c0_i32_0 = arith.constant 0 : i32
    %c0_i32_1 = arith.constant 0 : i32
    return %c0_i32, %c0_i32_0 : i32, i32
  }
  func.func @transform_5(%arg0: i32) -> (i32, i32) {
    %c0_i32 = arith.constant 0 : i32
    %c0_i32_0 = arith.constant 0 : i32
    %c0_i32_1 = arith.constant 0 : i32
    return %c0_i32, %c0_i32_0 : i32, i32
  }
  func.func @transform_6(%arg0: i32) -> (i32, i32) {
    %c0_i32 = arith.constant 0 : i32
    %c0_i32_0 = arith.constant 0 : i32
    %c0_i32_1 = arith.constant 0 : i32
    return %c0_i32, %c0_i32_0 : i32, i32
  }
  func.func @transform_7(%arg0: i32) -> (i32, i32) {
    %c0_i32 = arith.constant 0 : i32
    %c0_i32_0 = arith.constant 0 : i32
    %c0_i32_1 = arith.constant 0 : i32
    return %c0_i32, %c0_i32_0 : i32, i32
  }
  func.func @transform_8(%arg0: i32) -> (i32, i32) {
    %c0_i32 = arith.constant 0 : i32
    %c0_i32_0 = arith.constant 0 : i32
    %c0_i32_1 = arith.constant 0 : i32
    return %c0_i32, %c0_i32_0 : i32, i32
  }
  func.func @transform_9(%arg0: i32) -> (i32, i32) {
    %c0_i32 = arith.constant 0 : i32
    %c0_i32_0 = arith.constant 0 : i32
    return %arg0, %c0_i32 : i32, i32
  }
}

</mosaic_0001>

<llo_original>
// kernel: tpu_custom_call.1
$region0: #{tpu_custom_call.1}
  #allocation0 [shape = 'u32[]', space=smem, size = 0x4, offset = 0x4, fixed_abs, tag = 'smem constant byte address 0x4 - core index']
  #allocation1 [shape = 'u32[144,128]{1,0:T(1,128)}', space=vmem, size = 0x12000, scoped, tag = 'internal scratch']
  #allocation2 [shape = 'f32[1,1]{1,0:T(1,128)S(1)}', space=vmem, size = 0x200, scoped, tag = 'scoped memory for tpu_custom_call.1']
  %s0 = inlined_call_operand.vmem [shape: f32[8,2], index: 0, kind: input, shape index: {}]
  %s1 = inlined_call_operand.vmem [shape: f32[2,256], index: 1, kind: input, shape index: {}]
  %s2 = inlined_call_operand.vmem [shape: f32[1,256], index: 2, kind: input, shape index: {}]
  %s3 = inlined_call_operand.hbm [shape: f32[256,128], index: 3, kind: input, shape index: {}]
  %s4 = inlined_call_operand.vmem [shape: f32[1,128], index: 4, kind: input, shape index: {}]
  %s5 = inlined_call_operand.vmem [shape: f32[128,64], index: 5, kind: input, shape index: {}]
  %s6 = inlined_call_operand.vmem [shape: f32[1,64], index: 6, kind: input, shape index: {}]
  %s7 = inlined_call_operand.vmem [shape: f32[1,64], index: 7, kind: input, shape index: {}]
  %s8 = inlined_call_operand.<no memory space> [shape: f32[1,1], index: 8, kind: input, shape index: {}]
  %s9 = inlined_call_operand.vmem [shape: f32[8,1], index: 9, kind: output, shape index: {}]
  %s10 = sld [smem:[#allocation0]]
  $region50: #{tpu_custom_call.1} parent=0
    _
  %s12 = ssub.s32 1, %s10
  %s13 = scalar_select 0, %s12, %s10
  %v14 = vstv %s8
  %15 = vst [vmem:[#allocation2] sm:$0x1] %v14
  $region1: #{tpu_custom_call.1} parent=0
    #allocation3 [shape = 'u8[131072]{0}', space=vmem, size = 0x20000, scoped, tag = 'input window, operand 3, single buffered']
    #allocation4 [shape = 's32[1]{0}', space=sflag, size = 0x4, scoped, tag = 'scoped memory for tpu_custom_call.1']
    %16 = vsyncpa [#allocation4], 0
    // Predicated region
    $region2: #{tpu_custom_call.1} parent=1 // pred_check
      _
    $region3: #{tpu_custom_call.1} parent=1 // pred_check_branch
      %18 = sbr.rel (0) target = $region5
    $region4: #{tpu_custom_call.1} parent=1 // pred_region
      _
    $region5: #{tpu_custom_call.1} parent=1 // pred_fallthru
      _
    // Predicated region
    $region6: #{tpu_custom_call.1} parent=1 // pred_check
      _
    $region7: #{tpu_custom_call.1} parent=1 // pred_check_branch
      %20 = sbr.rel (0) target = $region9
    $region8: #{tpu_custom_call.1} parent=1 // pred_region
      _
    $region9: #{tpu_custom_call.1} parent=1 // pred_fallthru
      _
    // Predicated region
    $region10: #{tpu_custom_call.1} parent=1 // pred_check
      _
    $region11: #{tpu_custom_call.1} parent=1 // pred_check_branch
      %22 = sbr.rel (0) target = $region13
    $region12: #{tpu_custom_call.1} parent=1 // pred_region
      _
    $region13: #{tpu_custom_call.1} parent=1 // pred_fallthru
      _
    // Predicated region
    $region14: #{tpu_custom_call.1} parent=1 // pred_check
      _
    $region15: #{tpu_custom_call.1} parent=1 // pred_check_branch
      %24 = sbr.rel (0) target = $region17
    $region16: #{tpu_custom_call.1} parent=1 // pred_region
      %s26 = ssub.s32 4096, 4096
      %27 = vsyncadd [#allocation4], %s26
      %s28 = sshll.u32 [#allocation3], 4
      %s29 = int_to_ptr.vmem [resolvable:$true] %s28
      %34 = dma.hbm_to_vmem [thread:$0]  %s3, 4096, %s29, [#allocation4], 128, 128, 8
    $region17: #{tpu_custom_call.1} parent=1 // pred_fallthru
      _
    // Predicated region
    $region18: #{tpu_custom_call.1} parent=1 // pred_check
      _
    $region19: #{tpu_custom_call.1} parent=1 // pred_check_branch
      %36 = sbr.rel (0) target = $region21
    $region20: #{tpu_custom_call.1} parent=1 // pred_region
      _
    $region21: #{tpu_custom_call.1} parent=1 // pred_fallthru
      _
    // Predicated region
    $region22: #{tpu_custom_call.1} parent=1 // pred_check
      _
    $region23: #{tpu_custom_call.1} parent=1 // pred_check_branch
      %38 = sbr.rel (0) target = $region25
    $region24: #{tpu_custom_call.1} parent=1 // pred_region
      _
    $region25: #{tpu_custom_call.1} parent=1 // pred_fallthru
      _
    // Predicated region
    $region26: #{tpu_custom_call.1} parent=1 // pred_check
      _
    $region27: #{tpu_custom_call.1} parent=1 // pred_check_branch
      %40 = sbr.rel (0) target = $region29
    $region28: #{tpu_custom_call.1} parent=1 // pred_region
      _
    $region29: #{tpu_custom_call.1} parent=1 // pred_fallthru
      _
    // Predicated region
    $region30: #{tpu_custom_call.1} parent=1 // pred_check
      _
    $region31: #{tpu_custom_call.1} parent=1 // pred_check_branch
      %42 = sbr.rel (0) target = $region33
    $region32: #{tpu_custom_call.1} parent=1 // pred_region
      _
    $region33: #{tpu_custom_call.1} parent=1 // pred_fallthru
      _
    // Predicated region
    $region34: #{tpu_custom_call.1} parent=1 // pred_check
      _
    $region35: #{tpu_custom_call.1} parent=1 // pred_check_branch
      %44 = sbr.rel (0) target = $region37
    $region36: #{tpu_custom_call.1} parent=1 // pred_region
      _
    $region37: #{tpu_custom_call.1} parent=1 // pred_fallthru
      _
    // Predicated region
    $region38: #{tpu_custom_call.1} parent=1 // pred_check
      _
    $region39: #{tpu_custom_call.1} parent=1 // pred_check_branch
      %46 = sbr.rel (0) target = $region41
    $region40: #{tpu_custom_call.1} parent=1 // pred_region
      %47 = dma.done [#allocation4], 4096
    $region41: #{tpu_custom_call.1} parent=1 // pred_fallthru
      _
    %v48 = vld [vmem:[%s0] sm:$0xff]
    %v49 = vld [vmem:[%s1] ss:$2 sm:$0x3]
    %51 = vset.pattern.permute.xlu0 0
    %52 = vperm.xlu0 %51, %v48
    %v53 = vpop.permute.xlu0 %52
    %v56 = vlaneseq
    %v57 = vshrl.u32 %v56, 7
    %v58 = vsub.s32 0, %v57
    %v59 = vrot.slane %v49, %v58
    %v60 = vlaneseq
    %v61 = vshrl.u32 %v60, 7
    %v62 = vsub.s32 1, %v61
    %v63 = vrot.slane %v49, %v62
    %v66 = vmul.f32 %v53, %v59
    %v67 = vmul.f32 %v53, %v63
    %s68 = scalar_lea.vmem %s1, 1
    %v69 = vld [vmem:[%s68] ss:$2 sm:$0x3]
    %70 = vset.pattern.permute.xlu0 1
    %71 = vperm.xlu0 %70, %v48
    %v72 = vpop.permute.xlu0 %71
    %v75 = vlaneseq
    %v76 = vshrl.u32 %v75, 7
    %v77 = vsub.s32 0, %v76
    %v78 = vrot.slane %v69, %v77
    %v79 = vlaneseq
    %v80 = vshrl.u32 %v79, 7
    %v81 = vsub.s32 1, %v80
    %v82 = vrot.slane %v69, %v81
    %v85 = vmul.f32 %v72, %v78
    %v86 = vmul.f32 %v72, %v82
    %v87 = vadd.f32 %v66, %v85
    %v88 = vadd.f32 %v67, %v86
    %v89 = vld [vmem:[%s2] sm:$0x3]
    %v91 = vlaneseq
    %v92 = vshrl.u32 %v91, 7
    %v93 = vsub.s32 0, %v92
    %v94 = vrot.slane %v89, %v93
    %v95 = vlaneseq
    %v96 = vshrl.u32 %v95, 7
    %v97 = vsub.s32 1, %v96
    %v98 = vrot.slane %v89, %v97
    %v101 = vadd.f32 %v87, %v94
    %v102 = vadd.f32 %v88, %v98
    %v103 = vmax.f32 %v101, 0.0
    %v104 = vmax.f32 %v102, 0.0
    %v105 = vld [vmem:[#allocation3] sm:$0xff]
    %v106 = vld [vmem:[#allocation3 + $0x8] sm:$0xff]
    %v107 = vld [vmem:[#allocation3 + $0x10] sm:$0xff]
    %v108 = vld [vmem:[#allocation3 + $0x18] sm:$0xff]
    %v109 = vld [vmem:[#allocation3 + $0x20] sm:$0xff]
    %v110 = vld [vmem:[#allocation3 + $0x28] sm:$0xff]
    %v111 = vld [vmem:[#allocation3 + $0x30] sm:$0xff]
    %v112 = vld [vmem:[#allocation3 + $0x38] sm:$0xff]
    %v113 = vld [vmem:[#allocation3 + $0x40] sm:$0xff]
    %v114 = vld [vmem:[#allocation3 + $0x48] sm:$0xff]
    %v115 = vld [vmem:[#allocation3 + $0x50] sm:$0xff]
    %v116 = vld [vmem:[#allocation3 + $0x58] sm:$0xff]
    %v117 = vld [vmem:[#allocation3 + $0x60] sm:$0xff]
    %v118 = vld [vmem:[#allocation3 + $0x68] sm:$0xff]
    %v119 = vld [vmem:[#allocation3 + $0x70] sm:$0xff]
    %v120 = vld [vmem:[#allocation3 + $0x78] sm:$0xff]
    %v121 = vld [vmem:[#allocation3 + $0x80] sm:$0xff]
    %v122 = vld [vmem:[#allocation3 + $0x88] sm:$0xff]
    %v123 = vld [vmem:[#allocation3 + $0x90] sm:$0xff]
    %v124 = vld [vmem:[#allocation3 + $0x98] sm:$0xff]
    %v125 = vld [vmem:[#allocation3 + $0xa0] sm:$0xff]
    %v126 = vld [vmem:[#allocation3 + $0xa8] sm:$0xff]
    %v127 = vld [vmem:[#allocation3 + $0xb0] sm:$0xff]
    %v128 = vld [vmem:[#allocation3 + $0xb8] sm:$0xff]
    %v129 = vld [vmem:[#allocation3 + $0xc0] sm:$0xff]
    %v130 = vld [vmem:[#allocation3 + $0xc8] sm:$0xff]
    %v131 = vld [vmem:[#allocation3 + $0xd0] sm:$0xff]
    %v132 = vld [vmem:[#allocation3 + $0xd8] sm:$0xff]
    %v133 = vld [vmem:[#allocation3 + $0xe0] sm:$0xff]
    %v134 = vld [vmem:[#allocation3 + $0xe8] sm:$0xff]
    %v135 = vld [vmem:[#allocation3 + $0xf0] sm:$0xff]
    %v136 = vld [vmem:[#allocation3 + $0xf8] sm:$0xff]
    %v137 = vld [vmem:[%s4] sm:$0x1]
    %v139 = vlaneseq
    %v140 = vshrl.u32 %v139, 7
    %v141 = vsub.s32 0, %v140
    %v142 = vrot.slane %v137, %v141
    %144 = vmatprep.subr.mxu0 0.0
    %145 = vmatpush1.msra.mxu0 %v105
    %146 = vmatprep.subr.mxu0 0.0
    %147 = vmatpush1.msra.mxu0 %v106
    %148 = vmatprep.subr.mxu0 0.0
    %149 = vmatpush1.msra.mxu0 %v107
    %150 = vmatprep.subr.mxu0 0.0
    %151 = vmatpush1.msra.mxu0 %v108
    %152 = vmatprep.subr.mxu0 0.0
    %153 = vmatpush1.msra.mxu0 %v109
    %154 = vmatprep.subr.mxu0 0.0
    %155 = vmatpush1.msra.mxu0 %v110
    %156 = vmatprep.subr.mxu0 0.0
    %157 = vmatpush1.msra.mxu0 %v111
    %158 = vmatprep.subr.mxu0 0.0
    %159 = vmatpush1.msra.mxu0 %v112
    %160 = vmatprep.subr.mxu0 0.0
    %161 = vmatpush1.msra.mxu0 %v113
    %162 = vmatprep.subr.mxu0 0.0
    %163 = vmatpush1.msra.mxu0 %v114
    %164 = vmatprep.subr.mxu0 0.0
    %165 = vmatpush1.msra.mxu0 %v115
    %166 = vmatprep.subr.mxu0 0.0
    %167 = vmatpush1.msra.mxu0 %v116
    %168 = vmatprep.subr.mxu0 0.0
    %169 = vmatpush1.msra.mxu0 %v117
    %170 = vmatprep.subr.mxu0 0.0
    %171 = vmatpush1.msra.mxu0 %v118
    %172 = vmatprep.subr.mxu0 0.0
    %173 = vmatpush1.msra.mxu0 %v119
    %174 = vmatprep.subr.mxu0 0.0
    %175 = vmatpush1.msra.mxu0 %v120
    %176 = vmatprep.subr.mxu0 0.0
    %177 = vmatpush1.msra.mxu0 %v121
    %178 = vmatprep.subr.mxu0 0.0
    %179 = vmatpush1.msra.mxu0 %v122
    %180 = vmatprep.subr.mxu0 0.0
    %181 = vmatpush1.msra.mxu0 %v123
    %182 = vmatprep.subr.mxu0 0.0
    %183 = vmatpush1.msra.mxu0 %v124
    %184 = vmatprep.subr.mxu0 0.0
    %185 = vmatpush1.msra.mxu0 %v125
    %186 = vmatprep.subr.mxu0 0.0
    %187 = vmatpush1.msra.mxu0 %v126
    %188 = vmatprep.subr.mxu0 0.0
    %189 = vmatpush1.msra.mxu0 %v127
    %190 = vmatprep.subr.mxu0 0.0
    %191 = vmatpush1.msra.mxu0 %v128
    %192 = vmatprep.subr.mxu0 0.0
    %193 = vmatpush1.msra.mxu0 %v129
    %194 = vmatprep.subr.mxu0 0.0
    %195 = vmatpush1.msra.mxu0 %v130
    %196 = vmatprep.subr.mxu0 0.0
    %197 = vmatpush1.msra.mxu0 %v131
    %198 = vmatprep.subr.mxu0 0.0
    %199 = vmatpush1.msra.mxu0 %v132
    %200 = vmatprep.subr.mxu0 0.0
    %201 = vmatpush1.msra.mxu0 %v133
    %202 = vmatprep.subr.mxu0 0.0
    %203 = vmatpush1.msra.mxu0 %v134
    %204 = vmatprep.subr.mxu0 0.0
    %205 = vmatpush1.msra.mxu0 %v135
    %206 = vmatprep.subr.mxu0 0.0
    %207 = vmatpush1.msra.mxu0 %v136
    %208 = vmatprep.mubr.f32.mxu0 %v104
    %209 = vmatmul.mubr.f32.gmra.mrb[0].mxu0 %v103
    %v210 = vpop.f32.mrb[0].mxu0
    %v211 = vadd.f32 %v142, %v210
    %v212 = vpop.f32.mrb[0].mxu0
    %213 = vdwg.mxu0
    %v214 = vmax.f32 %v211, 0.0
    %v215 = vld [vmem:[%s5] sm:$0xff]
    %v216 = vld [vmem:[%s5 + $0x8] sm:$0xff]
    %v217 = vld [vmem:[%s5 + $0x10] sm:$0xff]
    %v218 = vld [vmem:[%s5 + $0x18] sm:$0xff]
    %v219 = vld [vmem:[%s5 + $0x20] sm:$0xff]
    %v220 = vld [vmem:[%s5 + $0x28] sm:$0xff]
    %v221 = vld [vmem:[%s5 + $0x30] sm:$0xff]
    %v222 = vld [vmem:[%s5 + $0x38] sm:$0xff]
    %v223 = vld [vmem:[%s5 + $0x40] sm:$0xff]
    %v224 = vld [vmem:[%s5 + $0x48] sm:$0xff]
    %v225 = vld [vmem:[%s5 + $0x50] sm:$0xff]
    %v226 = vld [vmem:[%s5 + $0x58] sm:$0xff]
    %v227 = vld [vmem:[%s5 + $0x60] sm:$0xff]
    %v228 = vld [vmem:[%s5 + $0x68] sm:$0xff]
    %v229 = vld [vmem:[%s5 + $0x70] sm:$0xff]
    %v230 = vld [vmem:[%s5 + $0x78] sm:$0xff]
    %v231 = vld [vmem:[%s6] sm:$0x1]
    %v233 = vlaneseq
    %v234 = vshrl.u32 %v233, 7
    %v235 = vsub.s32 0, %v234
    %v236 = vrot.slane %v231, %v235
    %238 = vmatprep.subr.mxu0 0.0
    %239 = vmatpush1.msra.mxu0 %v215
    %240 = vmatprep.subr.mxu0 0.0
    %241 = vmatpush1.msra.mxu0 %v216
    %242 = vmatprep.subr.mxu0 0.0
    %243 = vmatpush1.msra.mxu0 %v217
    %244 = vmatprep.subr.mxu0 0.0
    %245 = vmatpush1.msra.mxu0 %v218
    %246 = vmatprep.subr.mxu0 0.0
    %247 = vmatpush1.msra.mxu0 %v219
    %248 = vmatprep.subr.mxu0 0.0
    %249 = vmatpush1.msra.mxu0 %v220
    %250 = vmatprep.subr.mxu0 0.0
    %251 = vmatpush1.msra.mxu0 %v221
    %252 = vmatprep.subr.mxu0 0.0
    %253 = vmatpush1.msra.mxu0 %v222
    %254 = vmatprep.subr.mxu0 0.0
    %255 = vmatpush1.msra.mxu0 %v223
    %256 = vmatprep.subr.mxu0 0.0
    %257 = vmatpush1.msra.mxu0 %v224
    %258 = vmatprep.subr.mxu0 0.0
    %259 = vmatpush1.msra.mxu0 %v225
    %260 = vmatprep.subr.mxu0 0.0
    %261 = vmatpush1.msra.mxu0 %v226
    %262 = vmatprep.subr.mxu0 0.0
    %263 = vmatpush1.msra.mxu0 %v227
    %264 = vmatprep.subr.mxu0 0.0
    %265 = vmatpush1.msra.mxu0 %v228
    %266 = vmatprep.subr.mxu0 0.0
    %267 = vmatpush1.msra.mxu0 %v229
    %268 = vmatprep.subr.mxu0 0.0
    %269 = vmatpush1.msra.mxu0 %v230
    %270 = vmatprep.subr.mxu0 0.0
    %271 = vmatpush1.msra.mxu0 0.0
    %272 = vmatprep.subr.mxu0 0.0
    %273 = vmatpush1.msra.mxu0 0.0
    %274 = vmatprep.subr.mxu0 0.0
    %275 = vmatpush1.msra.mxu0 0.0
    %276 = vmatprep.subr.mxu0 0.0
    %277 = vmatpush1.msra.mxu0 0.0
    %278 = vmatprep.subr.mxu0 0.0
    %279 = vmatpush1.msra.mxu0 0.0
    %280 = vmatprep.subr.mxu0 0.0
    %281 = vmatpush1.msra.mxu0 0.0
    %282 = vmatprep.subr.mxu0 0.0
    %283 = vmatpush1.msra.mxu0 0.0
    %284 = vmatprep.subr.mxu0 0.0
    %285 = vmatpush1.msra.mxu0 0.0
    %286 = vmatprep.subr.mxu0 0.0
    %287 = vmatpush1.msra.mxu0 0.0
    %288 = vmatprep.subr.mxu0 0.0
    %289 = vmatpush1.msra.mxu0 0.0
    %290 = vmatprep.subr.mxu0 0.0
    %291 = vmatpush1.msra.mxu0 0.0
    %292 = vmatprep.subr.mxu0 0.0
    %293 = vmatpush1.msra.mxu0 0.0
    %294 = vmatprep.subr.mxu0 0.0
    %295 = vmatpush1.msra.mxu0 0.0
    %296 = vmatprep.subr.mxu0 0.0
    %297 = vmatpush1.msra.mxu0 0.0
    %298 = vmatprep.subr.mxu0 0.0
    %299 = vmatpush1.msra.mxu0 0.0
    %300 = vmatprep.subr.mxu0 0.0
    %301 = vmatpush1.msra.mxu0 0.0
    %302 = vmatprep.mubr.f32.mxu0 0.0
    %303 = vmatmul.mubr.f32.gmra.mrb[0].mxu0 %v214
    %v304 = vpop.f32.mrb[0].mxu0
    %v305 = vadd.f32 %v236, %v304
    %v306 = vpop.f32.mrb[0].mxu0
    %307 = vdwg.mxu0
    %v308 = vmax.f32 %v305, 0.0
    %v309 = vld [vmem:[%s7] sm:$0x1]
    %v311 = vlaneseq
    %v312 = vshrl.u32 %v311, 7
    %v313 = vsub.s32 0, %v312
    %v314 = vrot.slane %v309, %v313
    %v316 = vmul.f32 %v308, %v314
    %vm317 = vcmask 523264
    %v318 = vsel %vm317, %v316, 0.0
    %319 = vadd.xlane.f32.xlu0 %v318
    %v320 = vpop.xlane.xlu0 %319
    %v321 = vld [vmem:[#allocation2] sm:$0x1]
    %v323 = vlaneseq
    %v324 = vshrl.u32 %v323, 7
    %v325 = vsub.s32 0, %v324
    %v326 = vrot.slane %v321, %v325
    %v328 = vadd.f32 %v320, %v326
    %vm329 = vcmask 7168
    %330 = vst.msk [vmem:[%s9] sm:$0xff] %vm329, %v328
    // Predicated region
    $region42: #{tpu_custom_call.1} parent=1 // pred_check
      _
    $region43: #{tpu_custom_call.1} parent=1 // pred_check_branch
      %332 = sbr.rel (0) target = $region45
    $region44: #{tpu_custom_call.1} parent=1 // pred_region
      _
    $region45: #{tpu_custom_call.1} parent=1 // pred_fallthru
      _
    // Predicated region
    $region46: #{tpu_custom_call.1} parent=1 // pred_check
      _
    $region47: #{tpu_custom_call.1} parent=1 // pred_check_branch
      %334 = sbr.rel (0) target = $region49
    $region48: #{tpu_custom_call.1} parent=1 // pred_region
      _
    $region49: #{tpu_custom_call.1} parent=1 // pred_fallthru
      _
    %335 = vsyncpa [#allocation4], 1

</llo_original>
